<compile_context>
chip_gen: v5e
topology: v5e:2x2
jax: 0.10.0
libtpu: 0.0.40
codegen_flags: <defaults>
</compile_context>

<pallas_src>
import hashlib
from functools import lru_cache, partial
from typing import NamedTuple

import numpy as np

import jax
import jax.numpy as jnp
from jax.experimental import pallas as pl
from jax.experimental.pallas import tpu as pltpu


# --------------------------------------------------------------- utilities --
def _round_up(x, m):
    return ((x + m - 1) // m) * m


def _next_pow2(x):
    x = int(x)
    return 1 if x <= 1 else 1 << (x - 1).bit_length()


@lru_cache(maxsize=None)
def _device_kind():
    try:
        return jax.devices()[0].device_kind.lower()
    except Exception:
        return ""


@lru_cache(maxsize=None)
def _select_input_dtype():
    """Chip-aware 0/1 input dtype: int8 (v5e/v6e integer MXU), fp8 e4m3 (v7x,
    which has no integer MXU path), bf16 otherwise.  0/1 is exact in all."""
    kind = _device_kind()
    if "v7" in kind:
        fp8 = getattr(jnp, "float8_e4m3fn", None)
        return fp8 if fp8 is not None else jnp.bfloat16
    if any(s in kind for s in ("v5e", "v5 lite", "v5lite", "v6e", "v6 lite", "v6lite")):
        return jnp.int8
    return jnp.bfloat16


@lru_cache(maxsize=None)
def _vmem_limit_bytes():
    """Scoped-VMEM limit for the pallas_call, derived from real capacity."""
    kind = _device_kind()
    phys = None
    try:
        phys = int(pltpu.get_tpu_info().vmem_capacity_bytes)
    except Exception:
        phys = None
    if not phys or phys <= 0:
        phys = (64 if "v7" in kind else 128) * 1024 * 1024
    limit = int(phys * 0.85)
    if "v7" in kind:                       # 64 MiB per TensorCore physical
        limit = min(limit, 48 * 1024 * 1024)
    return int(max(32 * 1024 * 1024, min(limit, 110 * 1024 * 1024)))


def _pick_tile(n_pad, in_bytes, adj_budget_bytes):
    """Largest vertex tile (multiple of 128 dividing n_pad) whose
    double-buffered (n_pad, tk) adjacency slab fits the budget; prefer >= 2
    tiles so the DMA pipeline overlaps and the 2-way split-K is usable."""
    candidates = [c for c in (1024, 512, 256, 128)
                  if c <= n_pad and n_pad % c == 0
                  and 2 * n_pad * c * in_bytes <= adj_budget_bytes]
    if not candidates:
        return 128 if n_pad % 128 == 0 else n_pad
    multi = [c for c in candidates if n_pad // c >= 2]
    return multi[0] if multi else candidates[0]


# ------------------------------------------------------------------ kernel --
def traces_kernel(mask_ref, adj_t_ref, colors_ref, sig_ref):
    """One vertex tile of the fused (M @ A^T) @ one_hot(colors) product.

    mask_ref   : [B_pad, N_pad]  in_dtype  splitter cell masks (constant block
                                           index -> DMA'd once, stays resident)
    adj_t_ref  : [N_pad, TK]     in_dtype  A^T[:, tile] for this vertex tile
    colors_ref : [TK, 1]         int32     colours of this vertex tile (pad -1)
    sig_ref    : [B_pad, C_pad]  f32       per-split signature accumulator
    """
    k = pl.program_id(1)             # in-core reduction step over vertex tiles

    @pl.when(k == 0)
    def _init():
        sig_ref[...] = jnp.zeros_like(sig_ref)

    # neigh[b, i] = sum_j mask[b, j] * A[i, j]   (MXU).
    # int8 inputs accumulate in int32 (exact); bf16/fp8 inputs accumulate in
    # f32 (exact: 0/1 operands, counts bounded far below 2^24).
    if jnp.issubdtype(adj_t_ref.dtype, jnp.integer):
        neigh = jnp.dot(mask_ref[...], adj_t_ref[...],
                        preferred_element_type=jnp.int32).astype(jnp.float32)
    else:
        neigh = jnp.dot(mask_ref[...], adj_t_ref[...],
                        preferred_element_type=jnp.float32)

    # one_hot[t, c] = (colors[tile_t] == c), built in-VMEM for this tile only.
    # Padded vertices carry colour -1 and never match the iota (>= 0).
    tk = colors_ref.shape[0]
    c_pad = sig_ref.shape[1]
    col_iota = jax.lax.broadcasted_iota(jnp.int32, (tk, c_pad), 1)
    one_hot = (colors_ref[...] == col_iota).astype(jnp.float32)

    # Scatter-add by colour == matmul with one_hot.  Kept in f32 so integer
    # counts stay exact (neigh can exceed bf16's exact-integer range of 256).
    sig_ref[...] += jnp.dot(neigh, one_hot, preferred_element_type=jnp.float32)


# ---------------------------------------------------------- jitted wrapper --
@partial(jax.jit, static_argnames=("c_pad", "tk", "num_splits", "vmem_limit"))
def _traces_signatures(colors, adj_t, cell_ids_p, *, c_pad, tk, num_splits,
                       vmem_limit):
    """sig [B_pad, C_pad] f32 and bucket [B_pad] i32 for all splitters."""
    n = colors.shape[0]
    n_pad = adj_t.shape[0]
    b_pad = cell_ids_p.shape[0]
    in_dtype = adj_t.dtype

    colors_p = jnp.full((n_pad,), -1, jnp.int32).at[:n].set(
        colors.astype(jnp.int32))

    # One 0/1 mask row per splitter cell.  Padded splitter rows (cell id -2)
    # and padded vertices (colour -1) never match -> all-zero rows / columns.
    mask_bool = colors_p[None, :] == cell_ids_p[:, None]          # [b_pad, n_pad]
    mask = mask_bool.astype(jnp.float32).astype(in_dtype)

    # Bucket sizes in plain XLA (perf review: keeps the kernel free of the
    # wide reduce and of a lane-width-1 output).
    bucket = jnp.sum(mask_bool, axis=1, dtype=jnp.int32)          # [b_pad]

    colors_col = colors_p.reshape(n_pad, 1)

    tiles_per_split = n_pad // (tk * num_splits)
    grid = (num_splits, tiles_per_split)

    sig_parts = pl.pallas_call(
        traces_kernel,
        out_shape=jax.ShapeDtypeStruct((num_splits, b_pad, c_pad), jnp.float32),
        grid_spec=pltpu.PrefetchScalarGridSpec(
            num_scalar_prefetch=0,
            grid=grid,
            in_specs=[
                # mask: constant block index -> copied once, kept resident
                pl.BlockSpec((b_pad, n_pad), lambda p, k: (0, 0)),
                # adjacency: one column tile of A^T per reduction step
                pl.BlockSpec((n_pad, tk),
                             lambda p, k: (0, p * tiles_per_split + k)),
                # colours of this vertex tile
                pl.BlockSpec((tk, 1),
                             lambda p, k: (p * tiles_per_split + k, 0)),
            ],
            # per-split partial signature; leading dim squeezed in the kernel
            out_specs=pl.BlockSpec((None, b_pad, c_pad), lambda p, k: (p, 0, 0)),
        ),
        compiler_params=pltpu.CompilerParams(
            dimension_semantics=("parallel", "arbitrary"),
            vmem_limit_bytes=vmem_limit,
        ),
    )(mask, adj_t, colors_col)

    # Combine the per-split partial signatures (trivial XLA add).
    return jnp.sum(sig_parts, axis=0), bucket


# ------------------------------------------------- adjacency prep (hoisted) --
class PreparedAdjacency(NamedTuple):
    adj_t: jax.Array          # [n_pad, n_pad] A^T, padded, low precision
    n: int
    n_pad: int
    max_degree: int


def prepare_adjacency(adj_dense, *, symmetric=False, dtype=None):
    """Pad / (optionally) transpose / cast the adjacency ONCE; reuse the
    result across forward calls.  Set symmetric=True to skip the transpose."""
    adj = jnp.asarray(adj_dense)
    n = int(adj.shape[0])
    if adj.shape != (n, n):
        raise ValueError("adjacency must be square")
    n_pad = _round_up(max(n, 1), 128)
    if dtype is None:
        dtype = _select_input_dtype()
    src = adj if symmetric else adj.T                     # A symmetric => A^T == A
    adj_t = jnp.zeros((n_pad, n_pad), dtype).at[:n, :n].set(src.astype(dtype))
    # One-time host sync: max row-sum bounds every signature entry by n*max_deg.
    max_degree = int(jnp.max(jnp.sum(adj.astype(jnp.float32), axis=1)))
    return PreparedAdjacency(adj_t=adj_t, n=n, n_pad=n_pad, max_degree=max_degree)


def _launch(colors_dev, adj_t, cell_ids_dev, n_cells):
    """Derive VMEM-budget-aware tiling + split and invoke the jitted kernel."""
    n_pad = adj_t.shape[0]
    b_pad = cell_ids_dev.shape[0]
    in_bytes = np.dtype(adj_t.dtype).itemsize
    c_pad = max(128, _next_pow2(max(n_cells, 1)))
    vmem_limit = _vmem_limit_bytes()
    # Reserve VMEM for the resident mask (2 pipeline buffers), the signature
    # accumulator (2 buffers) and misc temps / compiler scratch; the rest
    # feeds the double-buffered adjacency tile stream.
    reserved = (2 * b_pad * n_pad * in_bytes
                + 2 * b_pad * c_pad * 4
                + 6 * 1024 * 1024)
    adj_budget = max(vmem_limit - reserved, 2 * n_pad * 128 * in_bytes)
    tk = _pick_tile(n_pad, in_bytes, adj_budget)
    n_tiles = n_pad // tk
    # 2-way split-K over vertex tiles: uses both TensorCores on multi-core
    # parts (v7x); on single-core parts it only adds a tiny partial-sum.
    num_splits = 2 if (n_tiles >= 2 and n_tiles % 2 == 0) else 1
    return _traces_signatures(colors_dev, adj_t, cell_ids_dev,
                              c_pad=c_pad, tk=tk, num_splits=num_splits,
                              vmem_limit=vmem_limit)


# --------------------------------------------------------------- host glue --
def stable_hash(arr_int64: np.ndarray) -> int:
    """SHA1 hash of a 1-D int64 array -> 64-bit int (matches PyTorch version)."""
    h = hashlib.sha1(np.ascontiguousarray(arr_int64, dtype=np.int64)
                     .tobytes()).digest()[:8]
    return int.from_bytes(h, "little")


_FORCE_BF16_INPUTS = False      # set if the chip-specific dtype fails to lower


def traces_head_forward(colors_in, adj_dense=None, alpha=None, *,
                        prepared=None, symmetric=False):
    """
    colors_in : int array [n]            initial colours (>= 0)
    adj_dense : 0/1 array [n, n]         dense adjacency, A[i, j] = edge i->j
                (the PyTorch module takes scipy CSR; densify before calling)
    alpha     : iterable of splitter vertices
    prepared  : optional PreparedAdjacency (from prepare_adjacency) to reuse
                the padded/transposed/cast adjacency across forward calls.
    """
    global _FORCE_BF16_INPUTS

    colors = jnp.asarray(colors_in, jnp.int32)
    n = int(colors.shape[0])

    if not alpha:
        # TODO(synk): refiner.global_refinement is an external injected
        # dependency (not defined in this module); colours passed through.
        return colors, (0, 0, 0)

    if prepared is None:
        if adj_dense is None:
            raise ValueError("need adj_dense or a prepared adjacency")
        prepared = prepare_adjacency(adj_dense, symmetric=symmetric)
    if prepared.n != n:
        raise ValueError("adjacency / colouring size mismatch")

    # Exactness guard: every signature entry is bounded by n * max_degree and
    # the (final) accumulation is f32, exact for integers below 2^24.
    if n * max(prepared.max_degree, 1) >= (1 << 24):
        raise ValueError("edge-signature counts may leave exact f32 range")

    alpha = [int(w) for w in alpha]
    b = len(alpha)
    b_pad = max(32, _next_pow2(b))      # 32 = int8/fp8 sublane packing

    # IterateWL is an external dependency (TODO below), so colours do not
    # change between splitter iterations; cell ids come from the initial
    # colouring and every splitter is processed in one batched kernel call.
    colors_host = np.asarray(colors)
    cell_ids_host = colors_host[np.asarray(alpha, dtype=np.int64)]
    n_cells = int(colors_host.max()) + 1

    # Pad cell ids on the host so the jit signature depends only on b_pad.
    cell_ids_padded = np.full((b_pad,), -2, np.int32)   # -2: never matches
    cell_ids_padded[:b] = cell_ids_host.astype(np.int32)
    cell_ids_dev = jnp.asarray(cell_ids_padded)

    adj_t = prepared.adj_t
    if _FORCE_BF16_INPUTS and adj_t.dtype != jnp.bfloat16:
        adj_t = adj_t.astype(jnp.bfloat16)

    try:
        sig_pad, bucket_pad = _launch(colors, adj_t, cell_ids_dev, n_cells)
        sig_pad, bucket_pad = jax.block_until_ready((sig_pad, bucket_pad))
    except Exception:
        if adj_t.dtype == jnp.bfloat16:
            raise
        # Lossless retry (0/1 values) for chips where the chosen
        # low-precision MXU path does not lower.
        _FORCE_BF16_INPUTS = True
        sig_pad, bucket_pad = _launch(colors, adj_t.astype(jnp.bfloat16),
                                      cell_ids_dev, n_cells)

    sig_np = np.rint(np.asarray(sig_pad[:b, :n_cells])).astype(np.int64)
    buckets = np.asarray(bucket_pad[:b]).astype(np.int64)

    trace = []
    for i in range(b):
        trace.append((int(cell_ids_host[i]), int(buckets[i]),
                      stable_hash(sig_np[i])))
        # TODO(synk): refiner.IterateWL is an external injected dependency
        # (not defined in this module); colours left unchanged.
    return colors, tuple(trace)


# ------------------------------------------------------------------ driver --
if __name__ == "__main__":
    def run_case(n, n_colors, alpha, symmetric, key):
        k1, k2 = jax.random.split(key)
        a = (jax.random.uniform(k1, (n, n)) < 0.3).astype(jnp.float32)
        adj = jnp.clip(a + a.T, 0.0, 1.0) if symmetric else a
        adj = adj * (1.0 - jnp.eye(n, dtype=jnp.float32))
        colors0 = jax.random.randint(k2, (n,), 0, n_colors, dtype=jnp.int32)

        # Adjacency prep hoisted out of the forward call and reusable.
        prepared = prepare_adjacency(adj, symmetric=symmetric)
        colors_out, trace = traces_head_forward(colors0, adj, alpha,
                                                prepared=prepared)
        jax.block_until_ready(colors_out)

        # -------- numpy reference check --------
        adj_np = np.asarray(adj, np.float64)
        colors_np = np.asarray(colors0, np.int64)
        n_cells_ref = int(colors_np.max()) + 1
        assert len(trace) == len(alpha)
        for (cell_id, bucket, sig_hash), w in zip(trace, alpha):
            ref_cell = int(colors_np[w])
            ref_mask = (colors_np == ref_cell).astype(np.float64)
            ref_bucket = int(ref_mask.sum())
            ref_neigh = (adj_np @ ref_mask).astype(np.int64)
            ref_sig = np.zeros(n_cells_ref, np.int64)
            np.add.at(ref_sig, colors_np, ref_neigh)
            assert cell_id == ref_cell, (cell_id, ref_cell)
            assert bucket == ref_bucket, (bucket, ref_bucket)
            assert sig_hash == stable_hash(ref_sig), "edge signature mismatch"
        return prepared, colors0, adj

    key = jax.random.PRNGKey(0)
    k1, k2 = jax.random.split(key)

    # 1) Small symmetric graph (single vertex tile, num_splits = 1).
    prepared, colors0, adj = run_case(16, 4, [0, 3, 7], True, k1)

    # 2) Reuse of the prepared (cached) adjacency across forward calls:
    #    no re-prep and no recompile (same padded shapes / static args).
    _, trace_again = traces_head_forward(colors0, adj, [1, 5],
                                         prepared=prepared)
    assert len(trace_again) == 2

    # 3) Larger asymmetric graph: exercises the transpose path, multiple
    #    vertex tiles and the 2-way split-K ("parallel") grid axis.
    run_case(200, 7, [2, 11, 57, 123], False, k2)

    # 4) No-alpha branch (global refinement path is an external dependency).
    colors_na, trace_na = traces_head_forward(colors0, adj, None)
    jax.block_until_ready(colors_na)
    assert trace_na == (0, 0, 0)

    print("KERNEL_OK")
</pallas_src>

<mosaic_0001>
module attributes {stable_mosaic.version = 11 : i64} {
  func.func @traces_kernel(%arg0: i32, %arg1: i32, %arg2: memref<32x128xbf16, #tpu.memory_space<vmem>>, %arg3: memref<128x128xbf16, #tpu.memory_space<vmem>>, %arg4: memref<128x1xi32, #tpu.memory_space<vmem>>, %arg5: memref<1x32x128xf32, #tpu.memory_space<vmem>>) attributes {dimension_semantics = [#tpu.dimension_semantics<parallel>, #tpu.dimension_semantics<arbitrary>], iteration_bounds = array<i64: 1, 1>, scalar_prefetch = 0 : i64, scratch_operands = 0 : i64, tpu.core_type = #tpu.core_type<tc>, window_params = [{pipeline_mode = #tpu.pipeline_mode<synchronous>, transform_indices = @transform_0, window_bounds = array<i64: 32, 128>}, {transform_indices = @transform_1, window_bounds = array<i64: 128, 128>}, {transform_indices = @transform_2, window_bounds = array<i64: 128, 1>}, {transform_indices = @transform_3, window_bounds = array<i64: 1, 32, 128>}]} {
    %c0_i32 = arith.constant 0 : i32
    %0 = arith.cmpi eq, %arg1, %c0_i32 : i32
    %1 = arith.extui %0 : i1 to i32
    %c0_i32_0 = arith.constant 0 : i32
    %2 = arith.cmpi ne, %1, %c0_i32_0 : i32
    scf.if %2 {
      %cst_13 = arith.constant 0.000000e+00 : f32
      %19 = vector.broadcast %cst_13 : f32 to vector<32x128xf32>
      %c0_14 = arith.constant 0 : index
      %c0_15 = arith.constant 0 : index
      %c0_16 = arith.constant 0 : index
      %20 = vector.load %arg5[%c0_14, %c0_15, %c0_16] : memref<1x32x128xf32, #tpu.memory_space<vmem>>, vector<1x32x128xf32>
      %21 = vector.shape_cast %20 : vector<1x32x128xf32> to vector<32x128xf32>
      %22 = vector.shape_cast %19 : vector<32x128xf32> to vector<1x32x128xf32>
      tpu.vector_store %arg5[%c0_14, %c0_15, %c0_16], %22 {strides = array<i32>} : memref<1x32x128xf32, #tpu.memory_space<vmem>>, vector<1x32x128xf32>,
    } else {
    }
    %c0 = arith.constant 0 : index
    %c0_1 = arith.constant 0 : index
    %3 = vector.load %arg2[%c0, %c0_1] : memref<32x128xbf16, #tpu.memory_space<vmem>>, vector<32x128xbf16>
    %c0_2 = arith.constant 0 : index
    %c0_3 = arith.constant 0 : index
    %4 = vector.load %arg3[%c0_2, %c0_3] : memref<128x128xbf16, #tpu.memory_space<vmem>>, vector<128x128xbf16>
    %cst = arith.constant dense<0.000000e+00> : vector<32x128xf32>
    %5 = tpu.matmul %3, %4, %cst {dimension_numbers = #tpu.dot_dimension_numbers<[1], [0], [0], [1], [0, 0, 1, 1], [], []>} : vector<32x128xbf16>, vector<128x128xbf16>, vector<32x128xf32> -> vector<32x128xf32>
    %6 = tpu.iota {dimensions = array<i32: 1>} : vector<128x128xi32>
    %c0_4 = arith.constant 0 : index
    %c0_5 = arith.constant 0 : index
    %7 = vector.load %arg4[%c0_4, %c0_5] : memref<128x1xi32, #tpu.memory_space<vmem>>, vector<128x1xi32>
    %8 = vector.broadcast %7 : vector<128x1xi32> to vector<128x128xi32>
    %9 = arith.cmpi eq, %8, %6 : vector<128x128xi32>
    %10 = arith.extui %9 : vector<128x128xi1> to vector<128x128xi32>
    %11 = arith.sitofp %10 : vector<128x128xi32> to vector<128x128xf32>
    %c0_6 = arith.constant 0 : index
    %c0_7 = arith.constant 0 : index
    %c0_8 = arith.constant 0 : index
    %12 = vector.load %arg5[%c0_6, %c0_7, %c0_8] : memref<1x32x128xf32, #tpu.memory_space<vmem>>, vector<1x32x128xf32>
    %13 = vector.shape_cast %12 : vector<1x32x128xf32> to vector<32x128xf32>
    %cst_9 = arith.constant dense<0.000000e+00> : vector<32x128xf32>
    %14 = tpu.matmul %5, %11, %cst_9 {dimension_numbers = #tpu.dot_dimension_numbers<[1], [0], [0], [1], [0, 0, 1, 1], [], []>} : vector<32x128xf32>, vector<128x128xf32>, vector<32x128xf32> -> vector<32x128xf32>
    %15 = arith.addf %13, %14 : vector<32x128xf32>
    %c0_10 = arith.constant 0 : index
    %c0_11 = arith.constant 0 : index
    %c0_12 = arith.constant 0 : index
    %16 = vector.load %arg5[%c0_10, %c0_11, %c0_12] : memref<1x32x128xf32, #tpu.memory_space<vmem>>, vector<1x32x128xf32>
    %17 = vector.shape_cast %16 : vector<1x32x128xf32> to vector<32x128xf32>
    %18 = vector.shape_cast %15 : vector<32x128xf32> to vector<1x32x128xf32>
    tpu.vector_store %arg5[%c0_10, %c0_11, %c0_12], %18 {strides = array<i32>} : memref<1x32x128xf32, #tpu.memory_space<vmem>>, vector<1x32x128xf32>,
    return
  }
  func.func @transform_0(%arg0: i32, %arg1: i32) -> (i32, i32) {
    %c0_i32 = arith.constant 0 : i32
    %c0_i32_0 = arith.constant 0 : i32
    %c0_i32_1 = arith.constant 0 : i32
    return %c0_i32, %c0_i32_0 : i32, i32
  }
  func.func @transform_1(%arg0: i32, %arg1: i32) -> (i32, i32) {
    %c1_i32 = arith.constant 1 : i32
    %0 = arith.muli %arg0, %c1_i32 : i32
    %1 = arith.addi %0, %arg1 : i32
    %c0_i32 = arith.constant 0 : i32
    %c0_i32_0 = arith.constant 0 : i32
    return %c0_i32, %1 : i32, i32
  }
  func.func @transform_2(%arg0: i32, %arg1: i32) -> (i32, i32) {
    %c1_i32 = arith.constant 1 : i32
    %0 = arith.muli %arg0, %c1_i32 : i32
    %1 = arith.addi %0, %arg1 : i32
    %c0_i32 = arith.constant 0 : i32
    %c0_i32_0 = arith.constant 0 : i32
    return %1, %c0_i32 : i32, i32
  }
  func.func @transform_3(%arg0: i32, %arg1: i32) -> (i32, i32, i32) {
    %c0_i32 = arith.constant 0 : i32
    %c0_i32_0 = arith.constant 0 : i32
    %c0_i32_1 = arith.constant 0 : i32
    return %arg0, %c0_i32, %c0_i32_0 : i32, i32, i32
  }
}

</mosaic_0001>

<llo_original>
// kernel: _traces_signatures.1
$region0: #{_traces_signatures.1}
  #allocation0 [shape = 'u32[]', space=smem, size = 0x4, offset = 0x4, fixed_abs, tag = 'smem constant byte address 0x4 - core index']
  #allocation1 [shape = 'u32[72,128]{1,0:T(1,128)}', space=vmem, size = 0x9000, scoped, tag = 'internal scratch']
  %s0 = inlined_call_operand.vmem [shape: bf16[32,128], index: 0, kind: input, shape index: {}]
  %s1 = inlined_call_operand.vmem [shape: bf16[128,128], index: 1, kind: input, shape index: {}]
  %s2 = inlined_call_operand.vmem [shape: s32[128,1], index: 2, kind: input, shape index: {}]
  %s3 = inlined_call_operand.hbm [shape: f32[1,32,128], index: 3, kind: output, shape index: {}]
  %s4 = sld [smem:[#allocation0]]
  $region26: #{_traces_signatures.1} parent=0
    _
  %s6 = ssub.s32 1, %s4
  %s7 = scalar_select 0, %s6, %s4
  $region1: #{_traces_signatures.1} parent=0
    #allocation2 [shape = 'u8[16384]{0}', space=vmem, size = 0x4000, scoped, tag = 'output window, operand 0, single buffered']
    #allocation3 [shape = 's32[1]{0}', space=sflag, size = 0x4, scoped, tag = 'scoped memory for _traces_signatures.1']
    %8 = vsyncpa [#allocation3], 0
    // Predicated region
    $region2: #{_traces_signatures.1} parent=1 // pred_check
      _
    $region3: #{_traces_signatures.1} parent=1 // pred_check_branch
      %10 = sbr.rel (0) target = $region5
    $region4: #{_traces_signatures.1} parent=1 // pred_region
      _
    $region5: #{_traces_signatures.1} parent=1 // pred_fallthru
      _
    // Predicated region
    $region6: #{_traces_signatures.1} parent=1 // pred_check
      _
    $region7: #{_traces_signatures.1} parent=1 // pred_check_branch
      %12 = sbr.rel (0) target = $region9
    $region8: #{_traces_signatures.1} parent=1 // pred_region
      %s13 = sadd.s32 0, 0
      %p14 = scmp.lt.s32.totalorder %s13, 0
      %s15 = scalar_select %p14, %s13, 0
      %s16 = smul.addr %s15, 4
      %s17 = scalar_lea.vmem %s1, %s16
      %s18 = sadd.s32 0, 0
    $region9: #{_traces_signatures.1} parent=1 // pred_fallthru
      _
    // Predicated region
    $region10: #{_traces_signatures.1} parent=1 // pred_check
      _
    $region11: #{_traces_signatures.1} parent=1 // pred_check_branch
      %20 = sbr.rel (0) target = $region13
    $region12: #{_traces_signatures.1} parent=1 // pred_region
      %s21 = sadd.s32 0, 0
      %s22 = smul.u32 16, %s21
      %p23 = scmp.lt.s32.totalorder %s22, 15
      %s24 = scalar_select %p23, %s22, 15
      %s25 = smul.addr %s24, 8
      %s26 = scalar_lea.vmem %s2, %s25
      %s27 = sadd.s32 0, 0
      %s28 = smul.u32 16, %s27
    $region13: #{_traces_signatures.1} parent=1 // pred_fallthru
      _
    %s29 = sadd.s32 0, 0
    %p30 = scmp.lt.s32.totalorder %s29, 0
    %s31 = scalar_select %p30, %s29, 0
    %s32 = smul.addr %s31, 4
    %s33 = scalar_lea.vmem %s1, %s32
    %s34 = sadd.s32 0, 0
    %s35 = smul.u32 16, %s34
    %p36 = scmp.lt.s32.totalorder %s35, 15
    %s37 = scalar_select %p36, %s35, 15
    %s38 = smul.addr %s37, 8
    %s39 = scalar_lea.vmem %s2, %s38
    %s40 = sadd.s32 0, 0
    %p41 = scmp.lt.s32.totalorder %s40, 0
    %s42 = scalar_select %p41, %s40, 0
    %s43 = smul.addr %s42, 4
    %s44 = scalar_lea.vmem %s1, %s43
    %s45 = sadd.s32 0, 0
    %s46 = sadd.s32 0, 0
    %s47 = smul.u32 16, %s46
    %p48 = scmp.lt.s32.totalorder %s47, 15
    %s49 = scalar_select %p48, %s47, 15
    %s50 = smul.addr %s49, 8
    %s51 = scalar_lea.vmem %s2, %s50
    %s52 = sadd.s32 0, 0
    %s53 = smul.u32 16, %s52
    %p54 = scmp.eq.s32.totalorder 0, 0
    // Predicated region
    $region14: #{_traces_signatures.1} parent=1 // pred_check
      %p55 = pneg %p54
    $region15: #{_traces_signatures.1} parent=1 // pred_check_branch
      %57 = sbr.rel (%p55) target = $region17
    $region16: #{_traces_signatures.1} parent=1 // pred_region
      %58 = vst [vmem:[#allocation2] sm:$0xff] 0.0
      %59 = vst [vmem:[#allocation2 + $0x8] sm:$0xff] 0.0
      %60 = vst [vmem:[#allocation2 + $0x10] sm:$0xff] 0.0
      %61 = vst [vmem:[#allocation2 + $0x18] sm:$0xff] 0.0
    $region17: #{_traces_signatures.1} parent=1 // pred_fallthru
      _
    %v62 = vld [vmem:[%s0] sm:$0xf]
    %v63 = vld [vmem:[%s0 + $0x4] sm:$0xf]
    %v64 = vld [vmem:[%s0 + $0x8] sm:$0xf]
    %v65 = vld [vmem:[%s0 + $0xc] sm:$0xf]
    %v66 = vld [vmem:[%s44] sm:$0xf]
    %v67 = vld [vmem:[%s44 + $0x4] sm:$0xf]
    %v68 = vld [vmem:[%s44 + $0x8] sm:$0xf]
    %v69 = vld [vmem:[%s44 + $0xc] sm:$0xf]
    %v70 = vld [vmem:[%s44 + $0x10] sm:$0xf]
    %v71 = vld [vmem:[%s44 + $0x14] sm:$0xf]
    %v72 = vld [vmem:[%s44 + $0x18] sm:$0xf]
    %v73 = vld [vmem:[%s44 + $0x1c] sm:$0xf]
    %v74 = vld [vmem:[%s44 + $0x20] sm:$0xf]
    %v75 = vld [vmem:[%s44 + $0x24] sm:$0xf]
    %v76 = vld [vmem:[%s44 + $0x28] sm:$0xf]
    %v77 = vld [vmem:[%s44 + $0x2c] sm:$0xf]
    %v78 = vld [vmem:[%s44 + $0x30] sm:$0xf]
    %v79 = vld [vmem:[%s44 + $0x34] sm:$0xf]
    %v80 = vld [vmem:[%s44 + $0x38] sm:$0xf]
    %v81 = vld [vmem:[%s44 + $0x3c] sm:$0xf]
    %v86 = vunpack.c.l.b16 %v62
    %v87 = vunpack.c.l.b16 %v63
    %v88 = vunpack.c.l.b16 %v64
    %v89 = vunpack.c.l.b16 %v65
    %v90 = vpack.c.b16 %v87, %v86
    %v91 = vpack.c.b16 %v89, %v88
    %v110 = vunpack.c.l.b16 %v66
    %v111 = vunpack.c.l.b16 %v67
    %v112 = vunpack.c.l.b16 %v68
    %v113 = vunpack.c.l.b16 %v69
    %v114 = vunpack.c.l.b16 %v70
    %v115 = vunpack.c.l.b16 %v71
    %v116 = vunpack.c.l.b16 %v72
    %v117 = vunpack.c.l.b16 %v73
    %v118 = vunpack.c.l.b16 %v74
    %v119 = vunpack.c.l.b16 %v75
    %v120 = vunpack.c.l.b16 %v76
    %v121 = vunpack.c.l.b16 %v77
    %v122 = vunpack.c.l.b16 %v78
    %v123 = vunpack.c.l.b16 %v79
    %v124 = vunpack.c.l.b16 %v80
    %v125 = vunpack.c.l.b16 %v81
    %v126 = vpack.c.b16 %v111, %v110
    %v127 = vpack.c.b16 %v113, %v112
    %v128 = vpack.c.b16 %v115, %v114
    %v129 = vpack.c.b16 %v117, %v116
    %v130 = vpack.c.b16 %v119, %v118
    %v131 = vpack.c.b16 %v121, %v120
    %v132 = vpack.c.b16 %v123, %v122
    %v133 = vpack.c.b16 %v125, %v124
    %142 = vmatpush.bf16.msra.mxu0 %v133
    %143 = vmatpush.bf16.msra.mxu0 %v132
    %144 = vmatpush.bf16.msra.mxu0 %v131
    %145 = vmatpush.bf16.msra.mxu0 %v130
    %146 = vmatpush.bf16.msra.mxu0 %v129
    %147 = vmatpush.bf16.msra.mxu0 %v128
    %148 = vmatpush.bf16.msra.mxu0 %v127
    %149 = vmatpush.bf16.msra.mxu0 %v126
    %150 = vmatmul.bf16.gmra.mxu0 %v90
    %v151 = vpop.f32.mrf.mxu0
    %v152 = vadd.f32 0.0, %v151
    %v153 = vpop.f32.mrf.mxu0
    %v154 = vadd.f32 0.0, %v153
    %155 = vmatmul.bf16.gmra.mxu0 %v91
    %v156 = vpop.f32.mrf.mxu0
    %v157 = vadd.f32 0.0, %v156
    %v158 = vpop.f32.mrf.mxu0
    %v159 = vadd.f32 0.0, %v158
    %160 = vdwg.mxu0
    %v161 = vlaneseq
    %v162 = vand.u32 %v161, 127
    %v163 = vld [vmem:[%s51] sm:$0xff]
    %v164 = vld [vmem:[%s51 + $0x8] sm:$0xff]
    %v165 = vld [vmem:[%s51 + $0x10] sm:$0xff]
    %v166 = vld [vmem:[%s51 + $0x18] sm:$0xff]
    %v167 = vld [vmem:[%s51 + $0x20] sm:$0xff]
    %v168 = vld [vmem:[%s51 + $0x28] sm:$0xff]
    %v169 = vld [vmem:[%s51 + $0x30] sm:$0xff]
    %v170 = vld [vmem:[%s51 + $0x38] sm:$0xff]
    %v171 = vld [vmem:[%s51 + $0x40] sm:$0xff]
    %v172 = vld [vmem:[%s51 + $0x48] sm:$0xff]
    %v173 = vld [vmem:[%s51 + $0x50] sm:$0xff]
    %v174 = vld [vmem:[%s51 + $0x58] sm:$0xff]
    %v175 = vld [vmem:[%s51 + $0x60] sm:$0xff]
    %v176 = vld [vmem:[%s51 + $0x68] sm:$0xff]
    %v177 = vld [vmem:[%s51 + $0x70] sm:$0xff]
    %v178 = vld [vmem:[%s51 + $0x78] sm:$0xff]
    %179 = vset.pattern.permute.xlu0 0
    %180 = vperm.xlu0 %179, %v163
    %v181 = vpop.permute.xlu0 %180
    %182 = vset.pattern.permute.xlu0 0
    %183 = vperm.xlu0 %182, %v164
    %v184 = vpop.permute.xlu0 %183
    %185 = vset.pattern.permute.xlu0 0
    %186 = vperm.xlu0 %185, %v165
    %v187 = vpop.permute.xlu0 %186
    %188 = vset.pattern.permute.xlu0 0
    %189 = vperm.xlu0 %188, %v166
    %v190 = vpop.permute.xlu0 %189
    %191 = vset.pattern.permute.xlu0 0
    %192 = vperm.xlu0 %191, %v167
    %v193 = vpop.permute.xlu0 %192
    %194 = vset.pattern.permute.xlu0 0
    %195 = vperm.xlu0 %194, %v168
    %v196 = vpop.permute.xlu0 %195
    %197 = vset.pattern.permute.xlu0 0
    %198 = vperm.xlu0 %197, %v169
    %v199 = vpop.permute.xlu0 %198
    %200 = vset.pattern.permute.xlu0 0
    %201 = vperm.xlu0 %200, %v170
    %v202 = vpop.permute.xlu0 %201
    %203 = vset.pattern.permute.xlu0 0
    %204 = vperm.xlu0 %203, %v171
    %v205 = vpop.permute.xlu0 %204
    %206 = vset.pattern.permute.xlu0 0
    %207 = vperm.xlu0 %206, %v172
    %v208 = vpop.permute.xlu0 %207
    %209 = vset.pattern.permute.xlu0 0
    %210 = vperm.xlu0 %209, %v173
    %v211 = vpop.permute.xlu0 %210
    %212 = vset.pattern.permute.xlu0 0
    %213 = vperm.xlu0 %212, %v174
    %v214 = vpop.permute.xlu0 %213
    %215 = vset.pattern.permute.xlu0 0
    %216 = vperm.xlu0 %215, %v175
    %v217 = vpop.permute.xlu0 %216
    %218 = vset.pattern.permute.xlu0 0
    %219 = vperm.xlu0 %218, %v176
    %v220 = vpop.permute.xlu0 %219
    %221 = vset.pattern.permute.xlu0 0
    %222 = vperm.xlu0 %221, %v177
    %v223 = vpop.permute.xlu0 %222
    %224 = vset.pattern.permute.xlu0 0
    %225 = vperm.xlu0 %224, %v178
    %v226 = vpop.permute.xlu0 %225
    %vm227 = vcmp.eq.s32.totalorder %v181, %v162
    %vm228 = vcmp.eq.s32.totalorder %v184, %v162
    %vm229 = vcmp.eq.s32.totalorder %v187, %v162
    %vm230 = vcmp.eq.s32.totalorder %v190, %v162
    %vm231 = vcmp.eq.s32.totalorder %v193, %v162
    %vm232 = vcmp.eq.s32.totalorder %v196, %v162
    %vm233 = vcmp.eq.s32.totalorder %v199, %v162
    %vm234 = vcmp.eq.s32.totalorder %v202, %v162
    %vm235 = vcmp.eq.s32.totalorder %v205, %v162
    %vm236 = vcmp.eq.s32.totalorder %v208, %v162
    %vm237 = vcmp.eq.s32.totalorder %v211, %v162
    %vm238 = vcmp.eq.s32.totalorder %v214, %v162
    %vm239 = vcmp.eq.s32.totalorder %v217, %v162
    %vm240 = vcmp.eq.s32.totalorder %v220, %v162
    %vm241 = vcmp.eq.s32.totalorder %v223, %v162
    %vm242 = vcmp.eq.s32.totalorder %v226, %v162
    %v243 = vsel %vm227, 1, 0
    %v244 = vsel %vm228, 1, 0
    %v245 = vsel %vm229, 1, 0
    %v246 = vsel %vm230, 1, 0
    %v247 = vsel %vm231, 1, 0
    %v248 = vsel %vm232, 1, 0
    %v249 = vsel %vm233, 1, 0
    %v250 = vsel %vm234, 1, 0
    %v251 = vsel %vm235, 1, 0
    %v252 = vsel %vm236, 1, 0
    %v253 = vsel %vm237, 1, 0
    %v254 = vsel %vm238, 1, 0
    %v255 = vsel %vm239, 1, 0
    %v256 = vsel %vm240, 1, 0
    %v257 = vsel %vm241, 1, 0
    %v258 = vsel %vm242, 1, 0
    %v259 = vcvt.s32.f32 %v243
    %v260 = vcvt.s32.f32 %v244
    %v261 = vcvt.s32.f32 %v245
    %v262 = vcvt.s32.f32 %v246
    %v263 = vcvt.s32.f32 %v247
    %v264 = vcvt.s32.f32 %v248
    %v265 = vcvt.s32.f32 %v249
    %v266 = vcvt.s32.f32 %v250
    %v267 = vcvt.s32.f32 %v251
    %v268 = vcvt.s32.f32 %v252
    %v269 = vcvt.s32.f32 %v253
    %v270 = vcvt.s32.f32 %v254
    %v271 = vcvt.s32.f32 %v255
    %v272 = vcvt.s32.f32 %v256
    %v273 = vcvt.s32.f32 %v257
    %v274 = vcvt.s32.f32 %v258
    %v275 = vld [vmem:[#allocation2] sm:$0xff]
    %v276 = vld [vmem:[#allocation2 + $0x8] sm:$0xff]
    %v277 = vld [vmem:[#allocation2 + $0x10] sm:$0xff]
    %v278 = vld [vmem:[#allocation2 + $0x18] sm:$0xff]
    %279 = vmatpush.msra.mxu0 %v274
    %280 = vmatpush.msra.mxu0 %v273
    %281 = vmatpush.msra.mxu0 %v272
    %282 = vmatpush.msra.mxu0 %v271
    %283 = vmatpush.msra.mxu0 %v270
    %284 = vmatpush.msra.mxu0 %v269
    %285 = vmatpush.msra.mxu0 %v268
    %286 = vmatpush.msra.mxu0 %v267
    %287 = vmatpush.msra.mxu0 %v266
    %288 = vmatpush.msra.mxu0 %v265
    %289 = vmatpush.msra.mxu0 %v264
    %290 = vmatpush.msra.mxu0 %v263
    %291 = vmatpush.msra.mxu0 %v262
    %292 = vmatpush.msra.mxu0 %v261
    %293 = vmatpush.msra.mxu0 %v260
    %294 = vmatpush.msra.mxu0 %v259
    %295 = vmatmul.f32.gmra.mxu0 %v152
    %v296 = vpop.f32.mrf.mxu0
    %v297 = vadd.f32 0.0, %v296
    %298 = vmatmul.f32.gmra.mxu0 %v154
    %v299 = vpop.f32.mrf.mxu0
    %v300 = vadd.f32 0.0, %v299
    %301 = vmatmul.f32.gmra.mxu0 %v157
    %v302 = vpop.f32.mrf.mxu0
    %v303 = vadd.f32 0.0, %v302
    %304 = vmatmul.f32.gmra.mxu0 %v159
    %v305 = vpop.f32.mrf.mxu0
    %v306 = vadd.f32 0.0, %v305
    %307 = vdwg.mxu0
    %v308 = vadd.f32 %v275, %v297
    %v309 = vadd.f32 %v276, %v300
    %v310 = vadd.f32 %v277, %v303
    %v311 = vadd.f32 %v278, %v306
    %312 = vst [vmem:[#allocation2] sm:$0xff] %v308
    %313 = vst [vmem:[#allocation2 + $0x8] sm:$0xff] %v309
    %314 = vst [vmem:[#allocation2 + $0x10] sm:$0xff] %v310
    %315 = vst [vmem:[#allocation2 + $0x18] sm:$0xff] %v311
    // Predicated region
    $region18: #{_traces_signatures.1} parent=1 // pred_check
      _
    $region19: #{_traces_signatures.1} parent=1 // pred_check_branch
      %317 = sbr.rel (0) target = $region21
    $region20: #{_traces_signatures.1} parent=1 // pred_region
      %319 = vsyncadd [#allocation3], 0
      %s320 = sshll.u32 [#allocation2], 4
      %s321 = int_to_ptr.vmem [resolvable:$true] %s320
      %s322 = sshll.u32 %s3, 4
      %s323 = int_to_ptr.hbm [resolvable:$true] %s322
      %328 = dma.vmem_to_hbm [thread:$0]  %s321, 512, %s323, [#allocation3], 128, 128, 8
    $region21: #{_traces_signatures.1} parent=1 // pred_fallthru
      _
    // Predicated region
    $region22: #{_traces_signatures.1} parent=1 // pred_check
      _
    $region23: #{_traces_signatures.1} parent=1 // pred_check_branch
      %330 = sbr.rel (0) target = $region25
    $region24: #{_traces_signatures.1} parent=1 // pred_region
      %332 = dma.done [#allocation3], 512
    $region25: #{_traces_signatures.1} parent=1 // pred_fallthru
      _
    %333 = vsyncpa [#allocation3], 1

</llo_original>
